<compile_context>
chip_gen: v7x
topology: tpu7x:2x2x1
jax: 0.10.0
libtpu: 0.0.40
codegen_flags: <defaults>
</compile_context>

<pallas_src>
import math

import jax
import jax.numpy as jnp
from jax.experimental import pallas as pl
from jax.experimental.pallas import tpu as pltpu

MIN_NORM = 1e-5
ATANH_EPS = 1e-5
PROJ_EPS = 1e-3


def _round_up(n: int, m: int) -> int:
    return ((n + m - 1) // m) * m


def _make_kernel(c: float):
    sqrt_c = math.sqrt(c)
    one_minus_eps = 1.0 - PROJ_EPS

    def kernel(x_ref, w_ref, b_ref, o_ref):
        x = x_ref[...]                                      # (tm, in_f), input dtype

        # ---- logmap0: per-row norm in f32, one broadcast multiply (no divides) ----
        xsq = (x * x).astype(jnp.float32)
        xn = jnp.sqrt(jnp.sum(xsq, axis=-1, keepdims=True))
        xn = jnp.maximum(xn, MIN_NORM)                      # (tm, 1)
        a = jnp.clip(sqrt_c * xn, -1.0 + ATANH_EPS, 1.0 - ATANH_EPS)
        artanh = 0.5 * (jnp.log1p(a) - jnp.log1p(-a))
        # artanh(sqrt_c*||x||) / (sqrt_c*||x||): per-row EUP reciprocal (free slot),
        # then a single full-width vmul.
        scale = artanh * pl.reciprocal(sqrt_c * xn, approx=True)     # (tm, 1)
        x_eucl = (x * scale).astype(w_ref.dtype)            # bf16 MXU operand

        # ---- Linear on the MXU: bf16 x bf16 -> f32 accumulate ----
        out = jnp.dot(x_eucl, w_ref[...], preferred_element_type=jnp.float32)
        out = out + b_ref[...].astype(jnp.float32)          # (tm, out_f) f32

        # ---- expmap0 + project, fused (no third norm reduction) ----
        un = jnp.sqrt(jnp.sum(out * out, axis=-1, keepdims=True))
        un = jnp.maximum(un, MIN_NORM)                      # (tm, 1)
        t = jnp.tanh(jnp.clip(sqrt_c * un, -15.0, 15.0))    # (tm, 1)
        inv = pl.reciprocal(sqrt_c * un, approx=True)       # (tm, 1), EUP
        # ||expmap0(out)|| == t / sqrt_c exactly, so projecting onto the ball of
        # radius (1-PROJ_EPS)/sqrt_c is just a clamp of t.
        factor = jnp.minimum(t, one_minus_eps) * inv        # (tm, 1)
        o_ref[...] = (out * factor).astype(o_ref.dtype)

    return kernel


def prepare_params(weight, bias, *, mxu_dtype=jnp.bfloat16):
    """One-time parameter prep (call at init, NOT per forward).

    weight (out_f, in_f) -> transposed + zero-padded (in_pad, out_pad) in an
    MXU-native dtype; bias (out_f,) -> zero-padded (1, out_pad) float32.
    Zero-padded rows/columns contribute 0 to every dot product and norm, so
    the padded layer is numerically identical to the original one.
    Pass mxu_dtype=jnp.float32 to keep exact float32 Linear numerics.
    Returns (w_t, b2, out_features).
    """
    weight = jnp.asarray(weight)
    bias = jnp.asarray(bias, jnp.float32)
    out_f, in_f = weight.shape
    in_pad = _round_up(max(in_f, 128), 128)
    out_pad = _round_up(max(out_f, 128), 128)
    w_t = weight.T.astype(mxu_dtype)                               # (in_f, out_f)
    w_t = jnp.pad(w_t, ((0, in_pad - in_f), (0, out_pad - out_f)))
    b2 = jnp.pad(bias.reshape(1, -1), ((0, 0), (0, out_pad - out_f)))
    return w_t, b2, out_f


def hyp_linear2(x, w_t, b2, c, *, out_features=None, tm=256, vmem_limit_bytes=None):
    """x: (B, in_f); w_t: (in_pad, out_pad) from prepare_params; b2: (1, out_pad)."""
    B, in_f = x.shape
    in_pad, out_pad = w_t.shape
    assert in_f <= in_pad, "input feature dim larger than prepared weight"
    assert in_pad % 128 == 0 and out_pad % 128 == 0
    if out_features is None:
        out_features = out_pad

    # Pad input features to the lane-aligned prepared width (zero cols are exact).
    if in_f != in_pad:
        x = jnp.pad(x, ((0, 0), (0, in_pad - in_f)))

    # Row tile: as large as the batch allows, multiple of 8 (sublanes).
    tm = max(8, min(tm, _round_up(B, 8)))
    tm = _round_up(tm, 8)
    B_pad = _round_up(B, tm)
    if B_pad != B:
        # Zero rows are safe (norms are clamped to >= 1e-5); sliced off below.
        x = jnp.pad(x, ((0, B_pad - B), (0, 0)))

    # VMEM budget: double-buffered x/out tiles + resident weight (2x conservative).
    est = (2 * tm * in_pad * x.dtype.itemsize
           + 2 * in_pad * out_pad * w_t.dtype.itemsize
           + 2 * out_pad * 4
           + 2 * tm * out_pad * x.dtype.itemsize)
    if vmem_limit_bytes is None:
        # Raise the default scoped limit when the tiles need more headroom.
        # (On v7x keep the total under ~56 MiB: shrink tm or add an out_f grid
        #  axis for very large layers.)
        vmem_limit_bytes = max(32 << 20, (est * 3) // 2 + (4 << 20))

    grid = (B_pad // tm,)
    out = pl.pallas_call(
        _make_kernel(float(c)),
        out_shape=jax.ShapeDtypeStruct((B_pad, out_pad), x.dtype),
        grid_spec=pltpu.PrefetchScalarGridSpec(
            num_scalar_prefetch=0,
            grid=grid,
            in_specs=[
                pl.BlockSpec((tm, in_pad), lambda i: (i, 0)),       # x row tile
                pl.BlockSpec((in_pad, out_pad), lambda i: (0, 0)),  # resident weight
                pl.BlockSpec((1, out_pad), lambda i: (0, 0)),       # bias
            ],
            out_specs=pl.BlockSpec((tm, out_pad), lambda i: (i, 0)),
        ),
        compiler_params=pltpu.CompilerParams(
            dimension_semantics=("parallel",),       # megacore-shard the batch grid
            vmem_limit_bytes=int(vmem_limit_bytes)),
    )(x, w_t, b2)
    return out[:B, :out_features]


def _reference(x, weight, bias, c, *, mxu_dtype=jnp.bfloat16):
    """Pure-JAX HypLinear2.forward (pmath semantics).  The matmul operands are cast
    to `mxu_dtype` so the check mirrors the kernel's bf16-on-the-MXU path."""
    sqrt_c = math.sqrt(c)
    xn = jnp.maximum(jnp.linalg.norm(x, axis=-1, keepdims=True), MIN_NORM)
    a = jnp.clip(sqrt_c * xn, -1.0 + ATANH_EPS, 1.0 - ATANH_EPS)
    x_eucl = x / xn / sqrt_c * (0.5 * (jnp.log1p(a) - jnp.log1p(-a)))
    out = jnp.dot(x_eucl.astype(mxu_dtype), weight.T.astype(mxu_dtype),
                  preferred_element_type=jnp.float32) + bias
    un = jnp.maximum(jnp.linalg.norm(out, axis=-1, keepdims=True), MIN_NORM)
    x_hyp = jnp.tanh(jnp.clip(sqrt_c * un, -15.0, 15.0)) * out / (sqrt_c * un)
    hn = jnp.maximum(jnp.linalg.norm(x_hyp, axis=-1, keepdims=True), MIN_NORM)
    maxnorm = (1.0 - PROJ_EPS) / sqrt_c
    return jnp.where(hn > maxnorm, x_hyp / hn * maxnorm, x_hyp)


if __name__ == "__main__":
    key = jax.random.PRNGKey(0)
    B, in_features, out_features = 24, 32, 48          # small, unaligned on purpose
    c = 1.0

    k_x, k_r, k_w, k_b = jax.random.split(key, 4)

    # Deterministic parameter init mimicking nn.Linear defaults.
    bound = 1.0 / math.sqrt(in_features)
    weight = jax.random.uniform(k_w, (out_features, in_features),
                                jnp.float32, minval=-bound, maxval=bound)
    bias = jax.random.uniform(k_b, (out_features,),
                              jnp.float32, minval=-bound, maxval=bound)

    # Inputs: points strictly inside the Poincare ball (row norms in [0.1, 0.8]).
    x = jax.random.normal(k_x, (B, in_features), jnp.float32)
    radii = jax.random.uniform(k_r, (B, 1), jnp.float32, minval=0.1, maxval=0.8)
    x = x * radii / jnp.maximum(jnp.linalg.norm(x, axis=-1, keepdims=True), 1e-6)

    w_t, b2, out_f = prepare_params(weight, bias)      # one-time, outside the hot path
    out = hyp_linear2(x, w_t, b2, c, out_features=out_f, tm=256)
    out = jax.block_until_ready(out)

    ref = _reference(x, weight, bias, c)
    assert out.shape == (B, out_features)
    # Tolerance covers bf16 MXU operands + the EUP approximate reciprocals.
    assert jnp.allclose(out, ref, atol=2e-3, rtol=2e-3), "mismatch vs reference"

    print("KERNEL_OK")
</pallas_src>

<mosaic_0001>
module attributes {stable_mosaic.version = 11 : i64} {
  func.func @kernel(%arg0: i32, %arg1: memref<24x128xf32, #tpu.memory_space<vmem>>, %arg2: memref<128x128xbf16, #tpu.memory_space<vmem>>, %arg3: memref<1x128xf32, #tpu.memory_space<vmem>>, %arg4: memref<24x128xf32, #tpu.memory_space<vmem>>) attributes {dimension_semantics = [#tpu.dimension_semantics<parallel>], iteration_bounds = array<i64: 1>, scalar_prefetch = 0 : i64, scratch_operands = 0 : i64, tpu.core_type = #tpu.core_type<tc>, window_params = [{transform_indices = @transform_0, window_bounds = array<i64: 24, 128>}, {pipeline_mode = #tpu.pipeline_mode<synchronous>, transform_indices = @transform_1, window_bounds = array<i64: 128, 128>}, {pipeline_mode = #tpu.pipeline_mode<synchronous>, transform_indices = @transform_2, window_bounds = array<i64: 1, 128>}, {transform_indices = @transform_3, window_bounds = array<i64: 24, 128>}]} {
    %c0 = arith.constant 0 : index
    %c0_0 = arith.constant 0 : index
    %0 = vector.load %arg1[%c0, %c0_0] : memref<24x128xf32, #tpu.memory_space<vmem>>, vector<24x128xf32>
    %1 = arith.mulf %0, %0 : vector<24x128xf32>
    %cst = arith.constant dense<0.000000e+00> : vector<24xf32>
    %2 = vector.multi_reduction <add>, %1, %cst [1] : vector<24x128xf32> to vector<24xf32>
    %3 = vector.shape_cast %2 : vector<24xf32> to vector<24x1xf32>
    %4 = math.sqrt %3 : vector<24x1xf32>
    %cst_1 = arith.constant 9.99999974E-6 : f32
    %5 = vector.broadcast %cst_1 : f32 to vector<24x1xf32>
    %6 = arith.maximumf %4, %5 : vector<24x1xf32>
    %cst_2 = arith.constant 1.000000e+00 : f32
    %7 = vector.broadcast %cst_2 : f32 to vector<24x1xf32>
    %8 = arith.mulf %7, %6 : vector<24x1xf32>
    %cst_3 = arith.constant -0.999989986 : f32
    %cst_4 = arith.constant 0.999989986 : f32
    %9 = vector.broadcast %cst_3 : f32 to vector<24x1xf32>
    %10 = arith.maximumf %9, %8 : vector<24x1xf32>
    %11 = vector.broadcast %cst_4 : f32 to vector<24x1xf32>
    %12 = arith.minimumf %11, %10 : vector<24x1xf32>
    %13 = math.log1p %12 : vector<24x1xf32>
    %cst_5 = arith.constant 0.000000e+00 : f32
    %14 = vector.broadcast %cst_5 : f32 to vector<24x1xf32>
    %15 = arith.subf %14, %12 : vector<24x1xf32>
    %16 = math.log1p %15 : vector<24x1xf32>
    %17 = arith.subf %13, %16 : vector<24x1xf32>
    %cst_6 = arith.constant 5.000000e-01 : f32
    %18 = vector.broadcast %cst_6 : f32 to vector<24x1xf32>
    %19 = arith.mulf %18, %17 : vector<24x1xf32>
    %cst_7 = arith.constant 1.000000e+00 : f32
    %20 = vector.broadcast %cst_7 : f32 to vector<24x1xf32>
    %21 = arith.mulf %20, %6 : vector<24x1xf32>
    %22 = tpu.reciprocal %21 {approx = true} : vector<24x1xf32> -> vector<24x1xf32>
    %23 = arith.mulf %19, %22 : vector<24x1xf32>
    %24 = vector.broadcast %23 : vector<24x1xf32> to vector<24x128xf32>
    %25 = arith.mulf %0, %24 : vector<24x128xf32>
    %26 = arith.truncf %25 : vector<24x128xf32> to vector<24x128xbf16>
    %c0_8 = arith.constant 0 : index
    %c0_9 = arith.constant 0 : index
    %27 = vector.load %arg2[%c0_8, %c0_9] : memref<128x128xbf16, #tpu.memory_space<vmem>>, vector<128x128xbf16>
    %cst_10 = arith.constant dense<0.000000e+00> : vector<24x128xf32>
    %28 = tpu.matmul %26, %27, %cst_10 {dimension_numbers = #tpu.dot_dimension_numbers<[1], [0], [0], [1], [0, 0, 1, 1], [], []>} : vector<24x128xbf16>, vector<128x128xbf16>, vector<24x128xf32> -> vector<24x128xf32>
    %c0_11 = arith.constant 0 : index
    %c0_12 = arith.constant 0 : index
    %29 = vector.load %arg3[%c0_11, %c0_12] : memref<1x128xf32, #tpu.memory_space<vmem>>, vector<1x128xf32>
    %30 = vector.broadcast %29 : vector<1x128xf32> to vector<24x128xf32>
    %31 = arith.addf %28, %30 : vector<24x128xf32>
    %32 = arith.mulf %31, %31 : vector<24x128xf32>
    %cst_13 = arith.constant dense<0.000000e+00> : vector<24xf32>
    %33 = vector.multi_reduction <add>, %32, %cst_13 [1] : vector<24x128xf32> to vector<24xf32>
    %34 = vector.shape_cast %33 : vector<24xf32> to vector<24x1xf32>
    %35 = math.sqrt %34 : vector<24x1xf32>
    %cst_14 = arith.constant 9.99999974E-6 : f32
    %36 = vector.broadcast %cst_14 : f32 to vector<24x1xf32>
    %37 = arith.maximumf %35, %36 : vector<24x1xf32>
    %cst_15 = arith.constant 1.000000e+00 : f32
    %38 = vector.broadcast %cst_15 : f32 to vector<24x1xf32>
    %39 = arith.mulf %38, %37 : vector<24x1xf32>
    %cst_16 = arith.constant -1.500000e+01 : f32
    %cst_17 = arith.constant 1.500000e+01 : f32
    %40 = vector.broadcast %cst_16 : f32 to vector<24x1xf32>
    %41 = arith.maximumf %40, %39 : vector<24x1xf32>
    %42 = vector.broadcast %cst_17 : f32 to vector<24x1xf32>
    %43 = arith.minimumf %42, %41 : vector<24x1xf32>
    %44 = math.tanh %43 : vector<24x1xf32>
    %cst_18 = arith.constant 1.000000e+00 : f32
    %45 = vector.broadcast %cst_18 : f32 to vector<24x1xf32>
    %46 = arith.mulf %45, %37 : vector<24x1xf32>
    %47 = tpu.reciprocal %46 {approx = true} : vector<24x1xf32> -> vector<24x1xf32>
    %cst_19 = arith.constant 9.990000e-01 : f32
    %48 = vector.broadcast %cst_19 : f32 to vector<24x1xf32>
    %49 = arith.minimumf %44, %48 : vector<24x1xf32>
    %50 = arith.mulf %49, %47 : vector<24x1xf32>
    %51 = vector.broadcast %50 : vector<24x1xf32> to vector<24x128xf32>
    %52 = arith.mulf %31, %51 : vector<24x128xf32>
    %c0_20 = arith.constant 0 : index
    %c0_21 = arith.constant 0 : index
    %53 = vector.load %arg4[%c0_20, %c0_21] : memref<24x128xf32, #tpu.memory_space<vmem>>, vector<24x128xf32>
    tpu.vector_store %arg4[%c0_20, %c0_21], %52 {strides = array<i32>} : memref<24x128xf32, #tpu.memory_space<vmem>>, vector<24x128xf32>,
    return
  }
  func.func @transform_0(%arg0: i32) -> (i32, i32) {
    %c0_i32 = arith.constant 0 : i32
    %c0_i32_0 = arith.constant 0 : i32
    return %arg0, %c0_i32 : i32, i32
  }
  func.func @transform_1(%arg0: i32) -> (i32, i32) {
    %c0_i32 = arith.constant 0 : i32
    %c0_i32_0 = arith.constant 0 : i32
    %c0_i32_1 = arith.constant 0 : i32
    return %c0_i32, %c0_i32_0 : i32, i32
  }
  func.func @transform_2(%arg0: i32) -> (i32, i32) {
    %c0_i32 = arith.constant 0 : i32
    %c0_i32_0 = arith.constant 0 : i32
    %c0_i32_1 = arith.constant 0 : i32
    return %c0_i32, %c0_i32_0 : i32, i32
  }
  func.func @transform_3(%arg0: i32) -> (i32, i32) {
    %c0_i32 = arith.constant 0 : i32
    %c0_i32_0 = arith.constant 0 : i32
    return %arg0, %c0_i32 : i32, i32
  }
}

</mosaic_0001>

<llo_original>
// kernel: tpu_custom_call.1
$region0: #{tpu_custom_call.1}
  #allocation0 [shape = 'u32[]', space=smem, size = 0x4, offset = 0x4, fixed_abs, tag = 'smem constant byte address 0x4 - core index']
  #allocation1 [shape = 'u32[144,128]{1,0:T(1,128)}', space=vmem, size = 0x12000, scoped, tag = 'internal scratch']
  %s0 = inlined_call_operand.hbm [shape: f32[24,128], index: 0, kind: input, shape index: {}]
  %s1 = inlined_call_operand.hbm [shape: bf16[128,128], index: 1, kind: input, shape index: {}]
  %s2 = inlined_call_operand.vmem [shape: f32[1,128], index: 2, kind: input, shape index: {}]
  %s3 = inlined_call_operand.hbm [shape: f32[24,128], index: 3, kind: output, shape index: {}]
  %s4 = sld [smem:[#allocation0]]
  $region30: #{tpu_custom_call.1} parent=0
    _
  %s6 = ssub.s32 1, %s4
  %s7 = scalar_select 0, %s6, %s4
  $region1: #{tpu_custom_call.1} parent=0
    #allocation2 [shape = 'u8[12288]{0}', space=vmem, size = 0x3000, scoped, tag = 'input window, operand 0, single buffered']
    #allocation3 [shape = 's32[1]{0}', space=sflag, size = 0x4, scoped, tag = 'scoped memory for tpu_custom_call.1']
    #allocation4 [shape = 's32[1]{0}', space=sflag, size = 0x4, scoped, tag = 'scoped memory for tpu_custom_call.1']
    #allocation5 [shape = 'u8[32768]{0}', space=vmem, size = 0x8000, scoped, tag = 'input window, operand 1, single buffered']
    #allocation6 [shape = 's32[1]{0}', space=sflag, size = 0x4, scoped, tag = 'scoped memory for tpu_custom_call.1']
    #allocation7 [shape = 'u8[12288]{0}', space=vmem, size = 0x3000, scoped, tag = 'output window, operand 0, single buffered']
    %8 = vsyncpa [#allocation3], 0
    %9 = vsyncpa [#allocation6], 0
    %10 = vsyncpa [#allocation4], 0
    // Predicated region
    $region2: #{tpu_custom_call.1} parent=1 // pred_check
      _
    $region3: #{tpu_custom_call.1} parent=1 // pred_check_branch
      %12 = sbr.rel (0) target = $region5
    $region4: #{tpu_custom_call.1} parent=1 // pred_region
      %s14 = ssub.s32 384, 384
      %15 = vsyncadd [#allocation3], %s14
      %s16 = sshll.u32 [#allocation2], 4
      %s17 = int_to_ptr.vmem [resolvable:$true] %s16
      %22 = dma.hbm_to_vmem [thread:$0]  %s0, 384, %s17, [#allocation3], 128, 128, 8
    $region5: #{tpu_custom_call.1} parent=1 // pred_fallthru
      _
    // Predicated region
    $region6: #{tpu_custom_call.1} parent=1 // pred_check
      _
    $region7: #{tpu_custom_call.1} parent=1 // pred_check_branch
      %24 = sbr.rel (0) target = $region9
    $region8: #{tpu_custom_call.1} parent=1 // pred_region
      %s26 = ssub.s32 1024, 1024
      %27 = vsyncadd [#allocation6], %s26
      %s28 = sshll.u32 [#allocation5], 4
      %s29 = int_to_ptr.vmem [resolvable:$true] %s28
      %34 = dma.hbm_to_vmem [thread:$0]  %s1, 1024, %s29, [#allocation6], 64, 64, 4
    $region9: #{tpu_custom_call.1} parent=1 // pred_fallthru
      _
    // Predicated region
    $region10: #{tpu_custom_call.1} parent=1 // pred_check
      _
    $region11: #{tpu_custom_call.1} parent=1 // pred_check_branch
      %36 = sbr.rel (0) target = $region13
    $region12: #{tpu_custom_call.1} parent=1 // pred_region
      _
    $region13: #{tpu_custom_call.1} parent=1 // pred_fallthru
      _
    // Predicated region
    $region14: #{tpu_custom_call.1} parent=1 // pred_check
      _
    $region15: #{tpu_custom_call.1} parent=1 // pred_check_branch
      %38 = sbr.rel (0) target = $region17
    $region16: #{tpu_custom_call.1} parent=1 // pred_region
      %39 = dma.done [#allocation3], 384
    $region17: #{tpu_custom_call.1} parent=1 // pred_fallthru
      _
    // Predicated region
    $region18: #{tpu_custom_call.1} parent=1 // pred_check
      _
    $region19: #{tpu_custom_call.1} parent=1 // pred_check_branch
      %41 = sbr.rel (0) target = $region21
    $region20: #{tpu_custom_call.1} parent=1 // pred_region
      %42 = dma.done [#allocation6], 1024
    $region21: #{tpu_custom_call.1} parent=1 // pred_fallthru
      _
    %v44 = vld [vmem:[#allocation2] sm:$0xff]
    %v45 = vld [vmem:[#allocation2 + $0x8] sm:$0xff]
    %v46 = vld [vmem:[#allocation2 + $0x10] sm:$0xff]
    %v47 = vmul.f32 %v44, %v44
    %v48 = vmul.f32 %v45, %v45
    %v49 = vmul.f32 %v46, %v46
    %50 = vadd.xlane.f32.xlu0 %v47
    %v51 = vpop.xlane.xlu0 %50
    %52 = vadd.xlane.f32.xlu0 %v48
    %v53 = vpop.xlane.xlu0 %52
    %54 = vadd.xlane.f32.xlu0 %v49
    %v55 = vpop.xlane.xlu0 %54
    %v56 = vrsqrt.pop %v51
    %v57 = vmul.f32 %v51, %v56
    %vm58 = vcmp.eq.f32.partialorder %v51, inf
    %v59 = vsel %vm58, %v51, %v57
    %vm60 = vcmp.eq.f32.partialorder %v51, 0.0
    %v61 = vand.u32 %v51, 2147483648
    %v62 = vsel %vm60, %v61, %v59
    %v63 = vrsqrt.pop %v53
    %v64 = vmul.f32 %v53, %v63
    %vm65 = vcmp.eq.f32.partialorder %v53, inf
    %v66 = vsel %vm65, %v53, %v64
    %vm67 = vcmp.eq.f32.partialorder %v53, 0.0
    %v68 = vand.u32 %v53, 2147483648
    %v69 = vsel %vm67, %v68, %v66
    %v70 = vrsqrt.pop %v55
    %v71 = vmul.f32 %v55, %v70
    %vm72 = vcmp.eq.f32.partialorder %v55, inf
    %v73 = vsel %vm72, %v55, %v71
    %vm74 = vcmp.eq.f32.partialorder %v55, 0.0
    %v75 = vand.u32 %v55, 2147483648
    %v76 = vsel %vm74, %v75, %v73
    %v77 = vmax.f32 %v62, 1e-05
    %v78 = vmax.f32 %v69, 1e-05
    %v79 = vmax.f32 %v76, 1e-05
    %v80 = vmax.f32 %v77, -0.99999
    %v81 = vmax.f32 %v78, -0.99999
    %v82 = vmax.f32 %v79, -0.99999
    %v83 = vmin.f32 %v80, 0.99999
    %v84 = vmin.f32 %v81, 0.99999
    %v85 = vmin.f32 %v82, 0.99999
    %v86 = vadd.f32 %v83, 1.0
    %v87 = vlog2.pop %v86
    %v88 = vmul.f32 %v87, 0.6931472
    %v89 = vmul.f32 -0.5, %v83
    %v90 = vadd.f32 %v89, 1.0
    %v91 = vmul.f32 %v90, %v83
    %v92 = vand.u32 2147483647, %v83
    %vm93 = vcmp.lt.f32.partialorder %v92, 0.0004427343
    %v94 = vsel %vm93, %v91, %v88
    %v95 = vadd.f32 %v84, 1.0
    %v96 = vlog2.pop %v95
    %v97 = vmul.f32 %v96, 0.6931472
    %v98 = vmul.f32 -0.5, %v84
    %v99 = vadd.f32 %v98, 1.0
    %v100 = vmul.f32 %v99, %v84
    %v101 = vand.u32 2147483647, %v84
    %vm102 = vcmp.lt.f32.partialorder %v101, 0.0004427343
    %v103 = vsel %vm102, %v100, %v97
    %v104 = vadd.f32 %v85, 1.0
    %v105 = vlog2.pop %v104
    %v106 = vmul.f32 %v105, 0.6931472
    %v107 = vmul.f32 -0.5, %v85
    %v108 = vadd.f32 %v107, 1.0
    %v109 = vmul.f32 %v108, %v85
    %v110 = vand.u32 2147483647, %v85
    %vm111 = vcmp.lt.f32.partialorder %v110, 0.0004427343
    %v112 = vsel %vm111, %v109, %v106
    %v113 = vsub.f32 0.0, %v83
    %v114 = vsub.f32 0.0, %v84
    %v115 = vsub.f32 0.0, %v85
    %v116 = vadd.f32 %v113, 1.0
    %v117 = vlog2.pop %v116
    %v118 = vmul.f32 %v117, 0.6931472
    %v119 = vmul.f32 -0.5, %v113
    %v120 = vadd.f32 %v119, 1.0
    %v121 = vmul.f32 %v120, %v113
    %v122 = vand.u32 2147483647, %v113
    %vm123 = vcmp.lt.f32.partialorder %v122, 0.0004427343
    %v124 = vsel %vm123, %v121, %v118
    %v125 = vadd.f32 %v114, 1.0
    %v126 = vlog2.pop %v125
    %v127 = vmul.f32 %v126, 0.6931472
    %v128 = vmul.f32 -0.5, %v114
    %v129 = vadd.f32 %v128, 1.0
    %v130 = vmul.f32 %v129, %v114
    %v131 = vand.u32 2147483647, %v114
    %vm132 = vcmp.lt.f32.partialorder %v131, 0.0004427343
    %v133 = vsel %vm132, %v130, %v127
    %v134 = vadd.f32 %v115, 1.0
    %v135 = vlog2.pop %v134
    %v136 = vmul.f32 %v135, 0.6931472
    %v137 = vmul.f32 -0.5, %v115
    %v138 = vadd.f32 %v137, 1.0
    %v139 = vmul.f32 %v138, %v115
    %v140 = vand.u32 2147483647, %v115
    %vm141 = vcmp.lt.f32.partialorder %v140, 0.0004427343
    %v142 = vsel %vm141, %v139, %v136
    %v143 = vsub.f32 %v94, %v124
    %v144 = vsub.f32 %v103, %v133
    %v145 = vsub.f32 %v112, %v142
    %v146 = vmul.f32 %v143, 0.5
    %v147 = vmul.f32 %v144, 0.5
    %v148 = vmul.f32 %v145, 0.5
    %v149 = vrcp.pop %v77
    %v150 = vrcp.pop %v78
    %v151 = vrcp.pop %v79
    %v152 = vmul.f32 %v146, %v149
    %v153 = vmul.f32 %v147, %v150
    %v154 = vmul.f32 %v148, %v151
    %v155 = vmul.f32 %v44, %v152
    %v156 = vmul.f32 %v45, %v153
    %v157 = vmul.f32 %v46, %v154
    %v158 = vpack.c.bf16 %v156, %v155
    %v159 = vpack.c.bf16 %v157, %v157
    %v160 = vld [vmem:[#allocation5] sm:$0xf]
    %v161 = vld [vmem:[#allocation5 + $0x4] sm:$0xf]
    %v162 = vld [vmem:[#allocation5 + $0x8] sm:$0xf]
    %v163 = vld [vmem:[#allocation5 + $0xc] sm:$0xf]
    %v164 = vld [vmem:[#allocation5 + $0x10] sm:$0xf]
    %v165 = vld [vmem:[#allocation5 + $0x14] sm:$0xf]
    %v166 = vld [vmem:[#allocation5 + $0x18] sm:$0xf]
    %v167 = vld [vmem:[#allocation5 + $0x1c] sm:$0xf]
    %v168 = vld [vmem:[#allocation5 + $0x20] sm:$0xf]
    %v169 = vld [vmem:[#allocation5 + $0x24] sm:$0xf]
    %v170 = vld [vmem:[#allocation5 + $0x28] sm:$0xf]
    %v171 = vld [vmem:[#allocation5 + $0x2c] sm:$0xf]
    %v172 = vld [vmem:[#allocation5 + $0x30] sm:$0xf]
    %v173 = vld [vmem:[#allocation5 + $0x34] sm:$0xf]
    %v174 = vld [vmem:[#allocation5 + $0x38] sm:$0xf]
    %v175 = vld [vmem:[#allocation5 + $0x3c] sm:$0xf]
    %v176 = vld [vmem:[%s2] sm:$0x1]
    %v178 = vlaneseq
    %v179 = vshrl.u32 %v178, 7
    %v180 = vsub.s32 0, %v179
    %v181 = vrot.slane %v176, %v180
    %v199 = vunpack.c.l.b16 %v160
    %v200 = vunpack.c.l.b16 %v161
    %v201 = vunpack.c.l.b16 %v162
    %v202 = vunpack.c.l.b16 %v163
    %v203 = vunpack.c.l.b16 %v164
    %v204 = vunpack.c.l.b16 %v165
    %v205 = vunpack.c.l.b16 %v166
    %v206 = vunpack.c.l.b16 %v167
    %v207 = vunpack.c.l.b16 %v168
    %v208 = vunpack.c.l.b16 %v169
    %v209 = vunpack.c.l.b16 %v170
    %v210 = vunpack.c.l.b16 %v171
    %v211 = vunpack.c.l.b16 %v172
    %v212 = vunpack.c.l.b16 %v173
    %v213 = vunpack.c.l.b16 %v174
    %v214 = vunpack.c.l.b16 %v175
    %v215 = vpack.c.b16 %v200, %v199
    %v216 = vpack.c.b16 %v202, %v201
    %v217 = vpack.c.b16 %v204, %v203
    %v218 = vpack.c.b16 %v206, %v205
    %v219 = vpack.c.b16 %v208, %v207
    %v220 = vpack.c.b16 %v210, %v209
    %v221 = vpack.c.b16 %v212, %v211
    %v222 = vpack.c.b16 %v214, %v213
    %231 = vmatprep.subr.bf16.mxu0 0
    %232 = vmatpush1.bf16.msra.mxu0 %v215
    %233 = vmatprep.subr.bf16.mxu0 0
    %234 = vmatpush1.bf16.msra.mxu0 %v216
    %235 = vmatprep.subr.bf16.mxu0 0
    %236 = vmatpush1.bf16.msra.mxu0 %v217
    %237 = vmatprep.subr.bf16.mxu0 0
    %238 = vmatpush1.bf16.msra.mxu0 %v218
    %239 = vmatprep.subr.bf16.mxu0 0
    %240 = vmatpush1.bf16.msra.mxu0 %v219
    %241 = vmatprep.subr.bf16.mxu0 0
    %242 = vmatpush1.bf16.msra.mxu0 %v220
    %243 = vmatprep.subr.bf16.mxu0 0
    %244 = vmatpush1.bf16.msra.mxu0 %v221
    %245 = vmatprep.subr.bf16.mxu0 0
    %246 = vmatpush1.bf16.msra.mxu0 %v222
    %247 = vmatprep.subr.bf16.mxu0 0
    %248 = vmatpush1.bf16.msra.mxu0 0
    %249 = vmatprep.subr.bf16.mxu0 0
    %250 = vmatpush1.bf16.msra.mxu0 0
    %251 = vmatprep.subr.bf16.mxu0 0
    %252 = vmatpush1.bf16.msra.mxu0 0
    %253 = vmatprep.subr.bf16.mxu0 0
    %254 = vmatpush1.bf16.msra.mxu0 0
    %255 = vmatprep.subr.bf16.mxu0 0
    %256 = vmatpush1.bf16.msra.mxu0 0
    %257 = vmatprep.subr.bf16.mxu0 0
    %258 = vmatpush1.bf16.msra.mxu0 0
    %259 = vmatprep.subr.bf16.mxu0 0
    %260 = vmatpush1.bf16.msra.mxu0 0
    %261 = vmatprep.subr.bf16.mxu0 0
    %262 = vmatpush1.bf16.msra.mxu0 0
    %263 = vmatprep.mubr.bf16.mxu0 0
    %264 = vmatmul.mubr.bf16.gmra.mrb[0].mxu0 %v158
    %v265 = vpop.f32.mrb[0].mxu0
    %v266 = vadd.f32 %v181, %v265
    %v267 = vpop.f32.mrb[0].mxu0
    %v268 = vpop.f32.mrb[0].mxu0
    %v269 = vadd.f32 %v181, %v268
    %v270 = vpop.f32.mrb[0].mxu0
    %271 = vmatprep.mubr.bf16.mxu0 0
    %272 = vmatmul.mubr.bf16.gmra.mrb[0].mxu0 %v159
    %v273 = vpop.f32.mrb[0].mxu0
    %v274 = vadd.f32 %v181, %v273
    %v275 = vpop.f32.mrb[0].mxu0
    %v276 = vpop.f32.mrb[0].mxu0
    %v277 = vpop.f32.mrb[0].mxu0
    %278 = vdwg.mxu0
    %v279 = vmul.f32 %v266, %v266
    %v280 = vmul.f32 %v269, %v269
    %v281 = vmul.f32 %v274, %v274
    %282 = vadd.xlane.f32.xlu0 %v279
    %v283 = vpop.xlane.xlu0 %282
    %284 = vadd.xlane.f32.xlu0 %v280
    %v285 = vpop.xlane.xlu0 %284
    %286 = vadd.xlane.f32.xlu0 %v281
    %v287 = vpop.xlane.xlu0 %286
    %v288 = vrsqrt.pop %v283
    %v289 = vmul.f32 %v283, %v288
    %vm290 = vcmp.eq.f32.partialorder %v283, inf
    %v291 = vsel %vm290, %v283, %v289
    %vm292 = vcmp.eq.f32.partialorder %v283, 0.0
    %v293 = vand.u32 %v283, 2147483648
    %v294 = vsel %vm292, %v293, %v291
    %v295 = vrsqrt.pop %v285
    %v296 = vmul.f32 %v285, %v295
    %vm297 = vcmp.eq.f32.partialorder %v285, inf
    %v298 = vsel %vm297, %v285, %v296
    %vm299 = vcmp.eq.f32.partialorder %v285, 0.0
    %v300 = vand.u32 %v285, 2147483648
    %v301 = vsel %vm299, %v300, %v298
    %v302 = vrsqrt.pop %v287
    %v303 = vmul.f32 %v287, %v302
    %vm304 = vcmp.eq.f32.partialorder %v287, inf
    %v305 = vsel %vm304, %v287, %v303
    %vm306 = vcmp.eq.f32.partialorder %v287, 0.0
    %v307 = vand.u32 %v287, 2147483648
    %v308 = vsel %vm306, %v307, %v305
    %v309 = vmax.f32 %v294, 1e-05
    %v310 = vmax.f32 %v301, 1e-05
    %v311 = vmax.f32 %v308, 1e-05
    %v312 = vmax.f32 %v309, -15.0
    %v313 = vmax.f32 %v310, -15.0
    %v314 = vmax.f32 %v311, -15.0
    %v315 = vmin.f32 %v312, 15.0
    %v316 = vmin.f32 %v313, 15.0
    %v317 = vmin.f32 %v314, 15.0
    %v318 = vtanh.pop %v315
    %v319 = vtanh.pop %v316
    %v320 = vtanh.pop %v317
    %v321 = vrcp.pop %v309
    %v322 = vrcp.pop %v310
    %v323 = vrcp.pop %v311
    %v324 = vmin.f32 %v318, 0.999
    %v325 = vmin.f32 %v319, 0.999
    %v326 = vmin.f32 %v320, 0.999
    %v327 = vmul.f32 %v324, %v321
    %v328 = vmul.f32 %v325, %v322
    %v329 = vmul.f32 %v326, %v323
    %v330 = vmul.f32 %v266, %v327
    %v331 = vmul.f32 %v269, %v328
    %v332 = vmul.f32 %v274, %v329
    %333 = vst [vmem:[#allocation7] sm:$0xff] %v330
    %334 = vst [vmem:[#allocation7 + $0x8] sm:$0xff] %v331
    %335 = vst [vmem:[#allocation7 + $0x10] sm:$0xff] %v332
    // Predicated region
    $region22: #{tpu_custom_call.1} parent=1 // pred_check
      _
    $region23: #{tpu_custom_call.1} parent=1 // pred_check_branch
      %337 = sbr.rel (0) target = $region25
    $region24: #{tpu_custom_call.1} parent=1 // pred_region
      %s339 = ssub.s32 384, 384
      %340 = vsyncadd [#allocation4], %s339
      %s341 = sshll.u32 [#allocation7], 4
      %s342 = int_to_ptr.vmem [resolvable:$true] %s341
      %347 = dma.vmem_to_hbm [thread:$0]  %s342, 384, %s3, [#allocation4], 128, 128, 8
    $region25: #{tpu_custom_call.1} parent=1 // pred_fallthru
      _
    // Predicated region
    $region26: #{tpu_custom_call.1} parent=1 // pred_check
      _
    $region27: #{tpu_custom_call.1} parent=1 // pred_check_branch
      %349 = sbr.rel (0) target = $region29
    $region28: #{tpu_custom_call.1} parent=1 // pred_region
      %350 = dma.done [#allocation4], 384
    $region29: #{tpu_custom_call.1} parent=1 // pred_fallthru
      _
    %351 = vsyncpa [#allocation3], 1
    %352 = vsyncpa [#allocation6], 1
    %353 = vsyncpa [#allocation4], 1

</llo_original>
